<compile_context>
chip_gen: v7x
topology: tpu7x:2x2x1
jax: 0.10.0
libtpu: 0.0.40
codegen_flags: <defaults>
</compile_context>

<pallas_src>
import jax
import jax.numpy as jnp
import numpy as np
from jax.experimental import pallas as pl
from jax.experimental.pallas import tpu as pltpu


def gmm_loglik_kernel(x_ref, w_ref, const_ref, o_ref):
    """One tile of samples: GMM log-likelihood minus threshold (lane-dense out)."""
    x = x_ref[...].astype(jnp.float32)            # (tm, D) native row-major tile
    D = x.shape[1]
    K = const_ref.shape[1]                        # small & static

    # Single fused NT matmul on the MXU:
    #   (K*D + K, D) @ (tm, D)^T -> (K*D + K, tm)   (lane-dense result)
    # Rows [k*D, (k+1)*D)    : P_k^T x              (quadratic term)
    # Row   K*D + k          : (Sigma_k^-1 mu_k).x  (linear term)
    y = jax.lax.dot_general(
        w_ref[...], x,
        dimension_numbers=(((1,), (1,)), ((), ())),
        preferred_element_type=jnp.float32,
        precision=jax.lax.Precision.HIGHEST,
    )

    # Statically unrolled single-pass (online) logsumexp over the K components.
    m = None
    s = None
    for k in range(K):
        yk = y[k * D:(k + 1) * D, :]                       # vreg-aligned sublane slice
        lin = y[K * D + k:K * D + k + 1, :]                # (1, tm)
        lp = const_ref[0, k] + lin - 0.5 * jnp.sum(yk * yk, axis=0, keepdims=True)
        if m is None:
            m = lp
            s = jnp.ones_like(lp)
        else:
            m_new = jnp.maximum(m, lp)
            s = s * jnp.exp(m - m_new) + jnp.exp(lp - m_new)
            m = m_new

    o_ref[...] = (m + jnp.log(s)).astype(o_ref.dtype)      # (1, tm) lane-dense store


def precompute_detector_params(means, covs, weights, threshold):
    """One-time ("fit"-time) preprocessing of the mixture parameters.

    Returns:
      w_cat: (K*D + K, D) f32 — stacked P_k^T (precision Cholesky, transposed)
             followed by K rows (Sigma_k^-1 mu_k)^T.
      const: (1, K) f32 — log w_k - 0.5*(D log 2pi + log|Sigma_k|
             + mu_k^T Sigma_k^-1 mu_k) - threshold.
    """
    K, D = means.shape
    chol = jnp.linalg.cholesky(covs)                                  # (K, D, D) lower
    eye = jnp.eye(D, dtype=covs.dtype)
    inv_chol = jax.vmap(
        lambda c: jax.scipy.linalg.solve_triangular(c, eye, lower=True)
    )(chol)                                                           # L_k^{-1}
    prec_chol = jnp.transpose(inv_chol, (0, 2, 1))                    # P_k: Sigma^-1 = P P^T

    w_quad = jnp.transpose(prec_chol, (0, 2, 1)).reshape(K * D, D)    # stacked P_k^T
    prec = jnp.einsum("kij,klj->kil", prec_chol, prec_chol)           # Sigma_k^-1
    lin = jnp.einsum("kij,kj->ki", prec, means)                       # Sigma_k^-1 mu_k
    w_cat = jnp.concatenate([w_quad, lin], axis=0).astype(jnp.float32)

    half_logdet_prec = -jnp.sum(
        jnp.log(jnp.diagonal(chol, axis1=1, axis2=2)), axis=-1)       # -0.5 log|Sigma|
    quad_mu = jnp.einsum("ki,ki->k", lin, means)                      # mu^T Sigma^-1 mu
    const = (jnp.log(weights) + half_logdet_prec
             - 0.5 * D * jnp.log(2.0 * jnp.pi)
             - 0.5 * quad_mu
             - threshold).astype(jnp.float32).reshape(1, K)
    return w_cat, const


def detector_mixture_forward(X, batch_size, w_cat, const, *, tm=8192):
    """Equivalent of DetectorMixture.forward(X, batch_size) for a fitted mixture."""
    N_full, D = X.shape
    K = const.shape[1]
    assert w_cat.shape == (K * D + K, D)

    # PyTorch: if len(X) > batch_size: X = X[:batch_size * (len(X) // batch_size)]
    # Done by shrinking the logical sample count (no HBM copy of X).
    n = N_full if N_full <= batch_size else batch_size * (N_full // batch_size)

    # Tile the sample axis; multiple of 128 so the (1, tm) output block stays
    # lane-aligned (unmasked full-lane stores for all but the last block).
    tm = max(128, (tm // 128) * 128)
    tm_eff = min(tm, pl.cdiv(n, 128) * 128)
    # Megacore (v7x has 2 TCs): prefer >=4 grid steps for mid/large inputs so
    # the "parallel" axis can be sharded, while keeping tiles big enough to
    # amortize per-step overhead.
    if pl.cdiv(n, tm_eff) < 4:
        tm_alt = max(4096, pl.cdiv(pl.cdiv(n, 4), 128) * 128)
        tm_eff = min(tm_eff, tm_alt)
    grid = (pl.cdiv(n, tm_eff),)

    # VMEM budget: the (tm, D) input block is lane-padded to (tm, 128) in VMEM,
    # double-buffered; output (1, tm) is sublane-padded to (8, tm).
    vmem_bytes = 2 * tm_eff * 128 * 4 + 2 * 8 * tm_eff * 4 + (2 << 20)
    vmem_limit = int(min(max(vmem_bytes, 32 << 20), 96 << 20))

    out = pl.pallas_call(
        gmm_loglik_kernel,
        out_shape=jax.ShapeDtypeStruct((1, n), jnp.float32),
        grid=grid,
        in_specs=[
            pl.BlockSpec((tm_eff, D), lambda i: (i, 0)),         # native (N, D) row chunk
            pl.BlockSpec((K * D + K, D), lambda i: (0, 0)),      # fused weights (resident)
            pl.BlockSpec(memory_space=pltpu.MemorySpace.SMEM),   # per-component consts
        ],
        out_specs=pl.BlockSpec((1, tm_eff), lambda i: (0, i)),   # lane-dense output
        compiler_params=pltpu.CompilerParams(
            dimension_semantics=("parallel",),                   # shard grid across TCs (v7x)
            vmem_limit_bytes=vmem_limit,
        ),
    )(X, w_cat, const)
    return out[0]                                                # (n,)


def reference_forward(X, batch_size, means, covs, weights, threshold):
    """Pure-JAX reference for correctness check."""
    N = X.shape[0]
    if N > batch_size:
        X = X[: batch_size * (N // batch_size)]
    D = X.shape[1]
    prec = jnp.linalg.inv(covs)                                        # (K, D, D)
    diff = X[:, None, :] - means[None, :, :]                           # (N, K, D)
    maha = jnp.einsum("nkd,kde,nke->nk", diff, prec, diff)             # (N, K)
    _, logdet_cov = jnp.linalg.slogdet(covs)                           # (K,)
    lp = (jnp.log(weights)[None, :]
          - 0.5 * (D * jnp.log(2.0 * jnp.pi) + logdet_cov[None, :] + maha))
    ll = jax.scipy.special.logsumexp(lp, axis=-1)
    return ll - threshold


if __name__ == "__main__":
    key = jax.random.PRNGKey(0)
    k_x, k_mu, k_cov, k_w = jax.random.split(key, 4)

    # Small, deterministic synthetic GMM ("fitted" state of the module).
    # TODO(synk): mixture fitting (.fit / EM) and state-dict I/O (get/set_extra_state)
    # are not kernels; only the forward scoring path is implemented here.
    N, D, K = 260, 8, 3
    batch_size = 64                                     # forward trims N -> 256

    X = jax.random.normal(k_x, (N, D), dtype=jnp.float32)
    means = jax.random.normal(k_mu, (K, D), dtype=jnp.float32)
    A = jax.random.normal(k_cov, (K, D, D), dtype=jnp.float32) * 0.3
    covs = jnp.einsum("kij,klj->kil", A, A) + 0.5 * jnp.eye(D)[None]   # SPD (K, D, D)
    weights = jax.nn.softmax(jax.random.normal(k_w, (K,), dtype=jnp.float32))
    threshold = jnp.float32(1.5)                        # would be set by .fit()

    # Hoisted, one-time parameter preprocessing (done at fit time, not per call).
    w_cat, const = precompute_detector_params(means, covs, weights, threshold)

    out = detector_mixture_forward(X, batch_size, w_cat, const)
    out = jax.block_until_ready(out)

    ref = reference_forward(X, batch_size, means, covs, weights, threshold)
    np.testing.assert_allclose(np.asarray(out), np.asarray(ref), rtol=1e-4, atol=1e-4)
    assert out.shape == (batch_size * (N // batch_size),)

    print("KERNEL_OK")
</pallas_src>

<mosaic_0001>
module attributes {stable_mosaic.version = 11 : i64} {
  func.func @gmm_loglik_kernel(%arg0: i32, %arg1: memref<256x8xf32, #tpu.memory_space<vmem>>, %arg2: memref<27x8xf32, #tpu.memory_space<vmem>>, %arg3: memref<1x3xf32, #tpu.memory_space<smem>>, %arg4: memref<1x256xf32, #tpu.memory_space<vmem>>) attributes {dimension_semantics = [#tpu.dimension_semantics<parallel>], iteration_bounds = array<i64: 1>, scalar_prefetch = 0 : i64, scratch_operands = 0 : i64, tpu.core_type = #tpu.core_type<tc>, window_params = [{transform_indices = @transform_0, window_bounds = array<i64: 256, 8>}, {pipeline_mode = #tpu.pipeline_mode<synchronous>, transform_indices = @transform_1, window_bounds = array<i64: 27, 8>}, {transform_indices = @transform_2, window_bounds = array<i64: 1, 3>}, {transform_indices = @transform_3, window_bounds = array<i64: 1, 256>}]} {
    %c0 = arith.constant 0 : index
    %c0_0 = arith.constant 0 : index
    %0 = vector.load %arg1[%c0, %c0_0] : memref<256x8xf32, #tpu.memory_space<vmem>>, vector<256x8xf32>
    %c0_1 = arith.constant 0 : index
    %c0_2 = arith.constant 0 : index
    %1 = vector.load %arg2[%c0_1, %c0_2] : memref<27x8xf32, #tpu.memory_space<vmem>>, vector<27x8xf32>
    %cst = arith.constant dense<0.000000e+00> : vector<27x256xf32>
    %2 = tpu.matmul %1, %0, %cst {dimension_numbers = #tpu.dot_dimension_numbers<[1], [1], [0], [0], [0, 0, 1, 0], [], []>, precision = #tpu.contract_precision<fp32>} : vector<27x8xf32>, vector<256x8xf32>, vector<27x256xf32> -> vector<27x256xf32>
    %3 = vector.extract_strided_slice %2 {offsets = [0, 0], sizes = [8, 256], strides = [1, 1]} : vector<27x256xf32> to vector<8x256xf32>
    %4 = vector.extract_strided_slice %2 {offsets = [24, 0], sizes = [1, 256], strides = [1, 1]} : vector<27x256xf32> to vector<1x256xf32>
    %c0_3 = arith.constant 0 : index
    %c0_4 = arith.constant 0 : index
    %5 = memref.load %arg3[%c0_3, %c0_4] : memref<1x3xf32, #tpu.memory_space<smem>>
    %6 = vector.broadcast %5 : f32 to vector<1x256xf32>
    %7 = arith.addf %6, %4 : vector<1x256xf32>
    %8 = arith.mulf %3, %3 : vector<8x256xf32>
    %cst_5 = arith.constant dense<0.000000e+00> : vector<256xf32>
    %9 = vector.multi_reduction <add>, %8, %cst_5 [0] : vector<8x256xf32> to vector<256xf32>
    %10 = vector.shape_cast %9 : vector<256xf32> to vector<1x256xf32>
    %cst_6 = arith.constant 5.000000e-01 : f32
    %11 = vector.broadcast %cst_6 : f32 to vector<1x256xf32>
    %12 = arith.mulf %11, %10 : vector<1x256xf32>
    %13 = arith.subf %7, %12 : vector<1x256xf32>
    %cst_7 = arith.constant 1.000000e+00 : f32
    %14 = vector.broadcast %cst_7 : f32 to vector<1x256xf32>
    %15 = vector.extract_strided_slice %2 {offsets = [8, 0], sizes = [8, 256], strides = [1, 1]} : vector<27x256xf32> to vector<8x256xf32>
    %16 = vector.extract_strided_slice %2 {offsets = [25, 0], sizes = [1, 256], strides = [1, 1]} : vector<27x256xf32> to vector<1x256xf32>
    %c0_8 = arith.constant 0 : index
    %c1 = arith.constant 1 : index
    %17 = memref.load %arg3[%c0_8, %c1] : memref<1x3xf32, #tpu.memory_space<smem>>
    %18 = vector.broadcast %17 : f32 to vector<1x256xf32>
    %19 = arith.addf %18, %16 : vector<1x256xf32>
    %20 = arith.mulf %15, %15 : vector<8x256xf32>
    %cst_9 = arith.constant dense<0.000000e+00> : vector<256xf32>
    %21 = vector.multi_reduction <add>, %20, %cst_9 [0] : vector<8x256xf32> to vector<256xf32>
    %22 = vector.shape_cast %21 : vector<256xf32> to vector<1x256xf32>
    %cst_10 = arith.constant 5.000000e-01 : f32
    %23 = vector.broadcast %cst_10 : f32 to vector<1x256xf32>
    %24 = arith.mulf %23, %22 : vector<1x256xf32>
    %25 = arith.subf %19, %24 : vector<1x256xf32>
    %26 = arith.maximumf %13, %25 : vector<1x256xf32>
    %27 = arith.subf %13, %26 : vector<1x256xf32>
    %28 = math.exp %27 : vector<1x256xf32>
    %29 = arith.mulf %14, %28 : vector<1x256xf32>
    %30 = arith.subf %25, %26 : vector<1x256xf32>
    %31 = math.exp %30 : vector<1x256xf32>
    %32 = arith.addf %29, %31 : vector<1x256xf32>
    %33 = vector.extract_strided_slice %2 {offsets = [16, 0], sizes = [8, 256], strides = [1, 1]} : vector<27x256xf32> to vector<8x256xf32>
    %34 = vector.extract_strided_slice %2 {offsets = [26, 0], sizes = [1, 256], strides = [1, 1]} : vector<27x256xf32> to vector<1x256xf32>
    %c0_11 = arith.constant 0 : index
    %c2 = arith.constant 2 : index
    %35 = memref.load %arg3[%c0_11, %c2] : memref<1x3xf32, #tpu.memory_space<smem>>
    %36 = vector.broadcast %35 : f32 to vector<1x256xf32>
    %37 = arith.addf %36, %34 : vector<1x256xf32>
    %38 = arith.mulf %33, %33 : vector<8x256xf32>
    %cst_12 = arith.constant dense<0.000000e+00> : vector<256xf32>
    %39 = vector.multi_reduction <add>, %38, %cst_12 [0] : vector<8x256xf32> to vector<256xf32>
    %40 = vector.shape_cast %39 : vector<256xf32> to vector<1x256xf32>
    %cst_13 = arith.constant 5.000000e-01 : f32
    %41 = vector.broadcast %cst_13 : f32 to vector<1x256xf32>
    %42 = arith.mulf %41, %40 : vector<1x256xf32>
    %43 = arith.subf %37, %42 : vector<1x256xf32>
    %44 = arith.maximumf %26, %43 : vector<1x256xf32>
    %45 = arith.subf %26, %44 : vector<1x256xf32>
    %46 = math.exp %45 : vector<1x256xf32>
    %47 = arith.mulf %32, %46 : vector<1x256xf32>
    %48 = arith.subf %43, %44 : vector<1x256xf32>
    %49 = math.exp %48 : vector<1x256xf32>
    %50 = arith.addf %47, %49 : vector<1x256xf32>
    %51 = math.log %50 : vector<1x256xf32>
    %52 = arith.addf %44, %51 : vector<1x256xf32>
    %c0_14 = arith.constant 0 : index
    %c0_15 = arith.constant 0 : index
    %53 = vector.load %arg4[%c0_14, %c0_15] : memref<1x256xf32, #tpu.memory_space<vmem>>, vector<1x256xf32>
    tpu.vector_store %arg4[%c0_14, %c0_15], %52 {strides = array<i32>} : memref<1x256xf32, #tpu.memory_space<vmem>>, vector<1x256xf32>,
    return
  }
  func.func @transform_0(%arg0: i32) -> (i32, i32) {
    %c0_i32 = arith.constant 0 : i32
    %c0_i32_0 = arith.constant 0 : i32
    return %arg0, %c0_i32 : i32, i32
  }
  func.func @transform_1(%arg0: i32) -> (i32, i32) {
    %c0_i32 = arith.constant 0 : i32
    %c0_i32_0 = arith.constant 0 : i32
    %c0_i32_1 = arith.constant 0 : i32
    return %c0_i32, %c0_i32_0 : i32, i32
  }
  func.func @transform_2(%arg0: i32) -> (i32, i32) {
    %c0_i32 = arith.constant 0 : i32
    %c0_i32_0 = arith.constant 0 : i32
    %c0_i32_1 = arith.constant 0 : i32
    return %c0_i32, %c0_i32_0 : i32, i32
  }
  func.func @transform_3(%arg0: i32) -> (i32, i32) {
    %c0_i32 = arith.constant 0 : i32
    %c0_i32_0 = arith.constant 0 : i32
    return %c0_i32, %arg0 : i32, i32
  }
}

</mosaic_0001>

<llo_original>
// kernel: tpu_custom_call.1
$region0: #{tpu_custom_call.1}
  #allocation0 [shape = 'u32[]', space=smem, size = 0x4, offset = 0x4, fixed_abs, tag = 'smem constant byte address 0x4 - core index']
  #allocation1 [shape = 'u32[144,128]{1,0:T(1,128)}', space=vmem, size = 0x12000, scoped, tag = 'internal scratch']
  %s0 = inlined_call_operand.vmem [shape: f32[260,8], index: 0, kind: input, shape index: {}]
  %s1 = inlined_call_operand.vmem [shape: f32[27,8], index: 1, kind: input, shape index: {}]
  %s2 = inlined_call_operand.vmem [shape: f32[1,3], index: 2, kind: input, shape index: {}]
  %s3 = inlined_call_operand.hbm [shape: f32[1,256], index: 3, kind: output, shape index: {}]
  %s4 = sld [smem:[#allocation0]]
  $region26: #{tpu_custom_call.1} parent=0
    _
  %s6 = ssub.s32 1, %s4
  %s7 = scalar_select 0, %s6, %s4
  $region1: #{tpu_custom_call.1} parent=0
    #allocation2 [shape = 'u8[512]{0}', space=smem, size = 0x200, scoped, tag = 'input window, operand 2, single buffered']
    #allocation3 [shape = 's32[1]{0}', space=sflag, size = 0x4, scoped, tag = 'scoped memory for tpu_custom_call.1']
    #allocation4 [shape = 's32[1]{0}', space=sflag, size = 0x4, scoped, tag = 'scoped memory for tpu_custom_call.1']
    #allocation5 [shape = 'u8[1024]{0}', space=vmem, size = 0x400, scoped, tag = 'output window, operand 0, single buffered']
    %8 = vsyncpa [#allocation4], 0
    %9 = vsyncpa [#allocation3], 0
    // Predicated region
    $region2: #{tpu_custom_call.1} parent=1 // pred_check
      _
    $region3: #{tpu_custom_call.1} parent=1 // pred_check_branch
      %11 = sbr.rel (0) target = $region5
    $region4: #{tpu_custom_call.1} parent=1 // pred_region
      _
    $region5: #{tpu_custom_call.1} parent=1 // pred_fallthru
      _
    // Predicated region
    $region6: #{tpu_custom_call.1} parent=1 // pred_check
      _
    $region7: #{tpu_custom_call.1} parent=1 // pred_check_branch
      %13 = sbr.rel (0) target = $region9
    $region8: #{tpu_custom_call.1} parent=1 // pred_region
      _
    $region9: #{tpu_custom_call.1} parent=1 // pred_fallthru
      _
    // Predicated region
    $region10: #{tpu_custom_call.1} parent=1 // pred_check
      _
    $region11: #{tpu_custom_call.1} parent=1 // pred_check_branch
      %15 = sbr.rel (0) target = $region13
    $region12: #{tpu_custom_call.1} parent=1 // pred_region
      %s17 = ssub.s32 16, 16
      %18 = vsyncadd [#allocation4], %s17
      %s20 = sshll.u32 %s2, 4
      %s21 = int_to_ptr.vmem [resolvable:$true] %s20
      %23 = dma.vmem_to_smem %s21, 16, [#allocation2], [#allocation4]
    $region13: #{tpu_custom_call.1} parent=1 // pred_fallthru
      _
    // Predicated region
    $region14: #{tpu_custom_call.1} parent=1 // pred_check
      _
    $region15: #{tpu_custom_call.1} parent=1 // pred_check_branch
      %25 = sbr.rel (0) target = $region17
    $region16: #{tpu_custom_call.1} parent=1 // pred_region
      %26 = dma.done [#allocation4], 16
    $region17: #{tpu_custom_call.1} parent=1 // pred_fallthru
      _
    %27 = sfence
    %v28 = vld [vmem:[%s0] sm:$0xff]
    %v29 = vld [vmem:[%s0 + $0x8] sm:$0xff]
    %v30 = vld [vmem:[%s0 + $0x10] sm:$0xff]
    %v31 = vld [vmem:[%s0 + $0x18] sm:$0xff]
    %v32 = vld [vmem:[%s0 + $0x20] sm:$0xff]
    %v33 = vld [vmem:[%s0 + $0x28] sm:$0xff]
    %v34 = vld [vmem:[%s0 + $0x30] sm:$0xff]
    %v35 = vld [vmem:[%s0 + $0x38] sm:$0xff]
    %v36 = vld [vmem:[%s0 + $0x40] sm:$0xff]
    %v37 = vld [vmem:[%s0 + $0x48] sm:$0xff]
    %v38 = vld [vmem:[%s0 + $0x50] sm:$0xff]
    %v39 = vld [vmem:[%s0 + $0x58] sm:$0xff]
    %v40 = vld [vmem:[%s0 + $0x60] sm:$0xff]
    %v41 = vld [vmem:[%s0 + $0x68] sm:$0xff]
    %v42 = vld [vmem:[%s0 + $0x70] sm:$0xff]
    %v43 = vld [vmem:[%s0 + $0x78] sm:$0xff]
    %v44 = vld [vmem:[%s0 + $0x80] sm:$0xff]
    %v45 = vld [vmem:[%s0 + $0x88] sm:$0xff]
    %v46 = vld [vmem:[%s0 + $0x90] sm:$0xff]
    %v47 = vld [vmem:[%s0 + $0x98] sm:$0xff]
    %v48 = vld [vmem:[%s0 + $0xa0] sm:$0xff]
    %v49 = vld [vmem:[%s0 + $0xa8] sm:$0xff]
    %v50 = vld [vmem:[%s0 + $0xb0] sm:$0xff]
    %v51 = vld [vmem:[%s0 + $0xb8] sm:$0xff]
    %v52 = vld [vmem:[%s0 + $0xc0] sm:$0xff]
    %v53 = vld [vmem:[%s0 + $0xc8] sm:$0xff]
    %v54 = vld [vmem:[%s0 + $0xd0] sm:$0xff]
    %v55 = vld [vmem:[%s0 + $0xd8] sm:$0xff]
    %v56 = vld [vmem:[%s0 + $0xe0] sm:$0xff]
    %v57 = vld [vmem:[%s0 + $0xe8] sm:$0xff]
    %v58 = vld [vmem:[%s0 + $0xf0] sm:$0xff]
    %v59 = vld [vmem:[%s0 + $0xf8] sm:$0xff]
    %v60 = vld [vmem:[%s1] sm:$0xff]
    %v61 = vld [vmem:[%s1 + $0x8] sm:$0xff]
    %v62 = vld [vmem:[%s1 + $0x10] sm:$0xff]
    %v63 = vld [vmem:[%s1 + $0x18] sm:$0x7]
    %vm64 = vcmask 64512
    %v66 = vsel %vm64, %v60, 0
    %v69 = vsel %vm64, %v61, 0
    %v72 = vsel %vm64, %v62, 0
    %v75 = vsel %vm64, %v63, 0
    %v78 = vsel %vm64, %v28, 0
    %v81 = vsel %vm64, %v29, 0
    %v84 = vsel %vm64, %v30, 0
    %v87 = vsel %vm64, %v31, 0
    %v90 = vsel %vm64, %v32, 0
    %v93 = vsel %vm64, %v33, 0
    %v96 = vsel %vm64, %v34, 0
    %v99 = vsel %vm64, %v35, 0
    %v102 = vsel %vm64, %v36, 0
    %v105 = vsel %vm64, %v37, 0
    %v108 = vsel %vm64, %v38, 0
    %v111 = vsel %vm64, %v39, 0
    %v114 = vsel %vm64, %v40, 0
    %v117 = vsel %vm64, %v41, 0
    %v120 = vsel %vm64, %v42, 0
    %v123 = vsel %vm64, %v43, 0
    %v126 = vsel %vm64, %v44, 0
    %v129 = vsel %vm64, %v45, 0
    %v132 = vsel %vm64, %v46, 0
    %v135 = vsel %vm64, %v47, 0
    %v138 = vsel %vm64, %v48, 0
    %v141 = vsel %vm64, %v49, 0
    %v144 = vsel %vm64, %v50, 0
    %v147 = vsel %vm64, %v51, 0
    %v150 = vsel %vm64, %v52, 0
    %v153 = vsel %vm64, %v53, 0
    %v156 = vsel %vm64, %v54, 0
    %v159 = vsel %vm64, %v55, 0
    %v162 = vsel %vm64, %v56, 0
    %v165 = vsel %vm64, %v57, 0
    %v168 = vsel %vm64, %v58, 0
    %v171 = vsel %vm64, %v59, 0
    %173 = vmatprep.subr.mxu0 0.0
    %v174 = vand.u32 %v78, 4294901760
    %175 = vmatpush1.xpose.msra.mxu0 %v174
    %176 = vmatprep.subr.mxu0 0.0
    %v177 = vand.u32 %v81, 4294901760
    %178 = vmatpush1.xpose.msra.mxu0 %v177
    %179 = vmatprep.subr.mxu0 0.0
    %v180 = vand.u32 %v84, 4294901760
    %181 = vmatpush1.xpose.msra.mxu0 %v180
    %182 = vmatprep.subr.mxu0 0.0
    %v183 = vand.u32 %v87, 4294901760
    %184 = vmatpush1.xpose.msra.mxu0 %v183
    %185 = vmatprep.subr.mxu0 0.0
    %v186 = vand.u32 %v90, 4294901760
    %187 = vmatpush1.xpose.msra.mxu0 %v186
    %188 = vmatprep.subr.mxu0 0.0
    %v189 = vand.u32 %v93, 4294901760
    %190 = vmatpush1.xpose.msra.mxu0 %v189
    %191 = vmatprep.subr.mxu0 0.0
    %v192 = vand.u32 %v96, 4294901760
    %193 = vmatpush1.xpose.msra.mxu0 %v192
    %194 = vmatprep.subr.mxu0 0.0
    %v195 = vand.u32 %v99, 4294901760
    %196 = vmatpush1.xpose.msra.mxu0 %v195
    %197 = vmatprep.subr.mxu0 0.0
    %v198 = vand.u32 %v102, 4294901760
    %199 = vmatpush1.xpose.msra.mxu0 %v198
    %200 = vmatprep.subr.mxu0 0.0
    %v201 = vand.u32 %v105, 4294901760
    %202 = vmatpush1.xpose.msra.mxu0 %v201
    %203 = vmatprep.subr.mxu0 0.0
    %v204 = vand.u32 %v108, 4294901760
    %205 = vmatpush1.xpose.msra.mxu0 %v204
    %206 = vmatprep.subr.mxu0 0.0
    %v207 = vand.u32 %v111, 4294901760
    %208 = vmatpush1.xpose.msra.mxu0 %v207
    %209 = vmatprep.subr.mxu0 0.0
    %v210 = vand.u32 %v114, 4294901760
    %211 = vmatpush1.xpose.msra.mxu0 %v210
    %212 = vmatprep.subr.mxu0 0.0
    %v213 = vand.u32 %v117, 4294901760
    %214 = vmatpush1.xpose.msra.mxu0 %v213
    %215 = vmatprep.subr.mxu0 0.0
    %v216 = vand.u32 %v120, 4294901760
    %217 = vmatpush1.xpose.msra.mxu0 %v216
    %218 = vmatprep.subr.mxu0 0.0
    %v219 = vand.u32 %v123, 4294901760
    %220 = vmatpush1.xpose.msra.mxu0 %v219
    %221 = vmatprep.subr.mxu0 0.0
    %v222 = vand.u32 %v126, 4294901760
    %223 = vmatpush1.xpose.msra.mxu0 %v222
    %224 = vmatprep.subr.mxu0 0.0
    %v225 = vand.u32 %v129, 4294901760
    %226 = vmatpush1.xpose.msra.mxu0 %v225
    %227 = vmatprep.subr.mxu0 0.0
    %v228 = vand.u32 %v132, 4294901760
    %229 = vmatpush1.xpose.msra.mxu0 %v228
    %230 = vmatprep.subr.mxu0 0.0
    %v231 = vand.u32 %v135, 4294901760
    %232 = vmatpush1.xpose.msra.mxu0 %v231
    %233 = vmatprep.subr.mxu0 0.0
    %v234 = vand.u32 %v138, 4294901760
    %235 = vmatpush1.xpose.msra.mxu0 %v234
    %236 = vmatprep.subr.mxu0 0.0
    %v237 = vand.u32 %v141, 4294901760
    %238 = vmatpush1.xpose.msra.mxu0 %v237
    %239 = vmatprep.subr.mxu0 0.0
    %v240 = vand.u32 %v144, 4294901760
    %241 = vmatpush1.xpose.msra.mxu0 %v240
    %242 = vmatprep.subr.mxu0 0.0
    %v243 = vand.u32 %v147, 4294901760
    %244 = vmatpush1.xpose.msra.mxu0 %v243
    %245 = vmatprep.subr.mxu0 0.0
    %v246 = vand.u32 %v150, 4294901760
    %247 = vmatpush1.xpose.msra.mxu0 %v246
    %248 = vmatprep.subr.mxu0 0.0
    %v249 = vand.u32 %v153, 4294901760
    %250 = vmatpush1.xpose.msra.mxu0 %v249
    %251 = vmatprep.subr.mxu0 0.0
    %v252 = vand.u32 %v156, 4294901760
    %253 = vmatpush1.xpose.msra.mxu0 %v252
    %254 = vmatprep.subr.mxu0 0.0
    %v255 = vand.u32 %v159, 4294901760
    %256 = vmatpush1.xpose.msra.mxu0 %v255
    %257 = vmatprep.subr.mxu0 0.0
    %v258 = vand.u32 %v162, 4294901760
    %259 = vmatpush1.xpose.msra.mxu0 %v258
    %260 = vmatprep.subr.mxu0 0.0
    %v261 = vand.u32 %v165, 4294901760
    %262 = vmatpush1.xpose.msra.mxu0 %v261
    %263 = vmatprep.subr.mxu0 0.0
    %v264 = vand.u32 %v168, 4294901760
    %265 = vmatpush1.xpose.msra.mxu0 %v264
    %266 = vmatprep.subr.mxu0 0.0
    %v267 = vand.u32 %v171, 4294901760
    %268 = vmatpush1.xpose.msra.mxu0 %v267
    %269 = vmatprep.mubr.f32.mxu0 0.0
    %v270 = vand.u32 %v66, 4294901760
    %v271 = vsub.f32 %v66, %v270
    %v272 = vand.u32 %v271, 4294901760
    %v273 = vsub.f32 %v271, %v272
    %v274 = vand.u32 %v273, 4294901760
    %275 = vmatmul.mubr.f32.gmra.mrb[0].mxu0 %v274
    %v276 = vpop.f32.mrb[0].mxu0
    %v277 = vadd.f32 0.0, %v276
    %v278 = vpop.f32.mrb[0].mxu0
    %v279 = vadd.f32 0.0, %v278
    %280 = vmatprep.mubr.f32.mxu0 0.0
    %v281 = vand.u32 %v69, 4294901760
    %v282 = vsub.f32 %v69, %v281
    %v283 = vand.u32 %v282, 4294901760
    %v284 = vsub.f32 %v282, %v283
    %v285 = vand.u32 %v284, 4294901760
    %286 = vmatmul.mubr.f32.gmra.mrb[0].mxu0 %v285
    %v287 = vpop.f32.mrb[0].mxu0
    %v288 = vadd.f32 0.0, %v287
    %v289 = vpop.f32.mrb[0].mxu0
    %v290 = vadd.f32 0.0, %v289
    %291 = vmatprep.mubr.f32.mxu0 0.0
    %v292 = vand.u32 %v72, 4294901760
    %v293 = vsub.f32 %v72, %v292
    %v294 = vand.u32 %v293, 4294901760
    %v295 = vsub.f32 %v293, %v294
    %v296 = vand.u32 %v295, 4294901760
    %297 = vmatmul.mubr.f32.gmra.mrb[0].mxu0 %v296
    %v298 = vpop.f32.mrb[0].mxu0
    %v299 = vadd.f32 0.0, %v298
    %v300 = vpop.f32.mrb[0].mxu0
    %v301 = vadd.f32 0.0, %v300
    %302 = vmatprep.mubr.f32.mxu0 0.0
    %v303 = vand.u32 %v75, 4294901760
    %v304 = vsub.f32 %v75, %v303
    %v305 = vand.u32 %v304, 4294901760
    %v306 = vsub.f32 %v304, %v305
    %v307 = vand.u32 %v306, 4294901760
    %308 = vmatmul.mubr.f32.gmra.mrb[0].mxu0 %v307
    %v309 = vpop.f32.mrb[0].mxu0
    %v310 = vadd.f32 0.0, %v309
    %v311 = vpop.f32.mrb[0].mxu0
    %v312 = vadd.f32 0.0, %v311
    %313 = vdwg.mxu0
    %314 = vmatprep.subr.mxu0 0.0
    %v315 = vand.u32 %v78, 4294901760
    %v316 = vsub.f32 %v78, %v315
    %v317 = vand.u32 %v316, 4294901760
    %v318 = vsub.f32 %v316, %v317
    %v319 = vand.u32 %v318, 4294901760
    %320 = vmatpush1.xpose.msra.mxu0 %v319
    %321 = vmatprep.subr.mxu0 0.0
    %v322 = vand.u32 %v81, 4294901760
    %v323 = vsub.f32 %v81, %v322
    %v324 = vand.u32 %v323, 4294901760
    %v325 = vsub.f32 %v323, %v324
    %v326 = vand.u32 %v325, 4294901760
    %327 = vmatpush1.xpose.msra.mxu0 %v326
    %328 = vmatprep.subr.mxu0 0.0
    %v329 = vand.u32 %v84, 4294901760
    %v330 = vsub.f32 %v84, %v329
    %v331 = vand.u32 %v330, 4294901760
    %v332 = vsub.f32 %v330, %v331
    %v333 = vand.u32 %v332, 4294901760
    %334 = vmatpush1.xpose.msra.mxu0 %v333
    %335 = vmatprep.subr.mxu0 0.0
    %v336 = vand.u32 %v87, 4294901760
    %v337 = vsub.f32 %v87, %v336
    %v338 = vand.u32 %v337, 4294901760
    %v339 = vsub.f32 %v337, %v338
    %v340 = vand.u32 %v339, 4294901760
    %341 = vmatpush1.xpose.msra.mxu0 %v340
    %342 = vmatprep.subr.mxu0 0.0
    %v343 = vand.u32 %v90, 4294901760
    %v344 = vsub.f32 %v90, %v343
    %v345 = vand.u32 %v344, 4294901760
    %v346 = vsub.f32 %v344, %v345
    %v347 = vand.u32 %v346, 4294901760
    %348 = vmatpush1.xpose.msra.mxu0 %v347
    %349 = vmatprep.subr.mxu0 0.0
    %v350 = vand.u32 %v93, 4294901760
    %v351 = vsub.f32 %v93, %v350
    %v352 = vand.u32 %v351, 4294901760
    %v353 = vsub.f32 %v351, %v352
    %v354 = vand.u32 %v353, 4294901760
    %355 = vmatpush1.xpose.msra.mxu0 %v354
    %356 = vmatprep.subr.mxu0 0.0
    %v357 = vand.u32 %v96, 4294901760
    %v358 = vsub.f32 %v96, %v357
    %v359 = vand.u32 %v358, 4294901760
    %v360 = vsub.f32 %v358, %v359
    %v361 = vand.u32 %v360, 4294901760
    %362 = vmatpush1.xpose.msra.mxu0 %v361
    %363 = vmatprep.subr.mxu0 0.0
    %v364 = vand.u32 %v99, 4294901760
    %v365 = vsub.f32 %v99, %v364
    %v366 = vand.u32 %v365, 4294901760
    %v367 = vsub.f32 %v365, %v366
    %v368 = vand.u32 %v367, 4294901760
    %369 = vmatpush1.xpose.msra.mxu0 %v368
    %370 = vmatprep.subr.mxu0 0.0
    %v371 = vand.u32 %v102, 4294901760
    %v372 = vsub.f32 %v102, %v371
    %v373 = vand.u32 %v372, 4294901760
    %v374 = vsub.f32 %v372, %v373
    %v375 = vand.u32 %v374, 4294901760
    %376 = vmatpush1.xpose.msra.mxu0 %v375
    %377 = vmatprep.subr.mxu0 0.0
    %v378 = vand.u32 %v105, 4294901760
    %v379 = vsub.f32 %v105, %v378
    %v380 = vand.u32 %v379, 4294901760
    %v381 = vsub.f32 %v379, %v380
    %v382 = vand.u32 %v381, 4294901760
    %383 = vmatpush1.xpose.msra.mxu0 %v382
    %384 = vmatprep.subr.mxu0 0.0
    %v385 = vand.u32 %v108, 4294901760
    %v386 = vsub.f32 %v108, %v385
    %v387 = vand.u32 %v386, 4294901760
    %v388 = vsub.f32 %v386, %v387
    %v389 = vand.u32 %v388, 4294901760
    %390 = vmatpush1.xpose.msra.mxu0 %v389
    %391 = vmatprep.subr.mxu0 0.0
    %v392 = vand.u32 %v111, 4294901760
    %v393 = vsub.f32 %v111, %v392
    %v394 = vand.u32 %v393, 4294901760
    %v395 = vsub.f32 %v393, %v394
    %v396 = vand.u32 %v395, 4294901760
    %397 = vmatpush1.xpose.msra.mxu0 %v396
    %398 = vmatprep.subr.mxu0 0.0
    %v399 = vand.u32 %v114, 4294901760
    %v400 = vsub.f32 %v114, %v399
    %v401 = vand.u32 %v400, 4294901760
    %v402 = vsub.f32 %v400, %v401
    %v403 = vand.u32 %v402, 4294901760
    %404 = vmatpush1.xpose.msra.mxu0 %v403
    %405 = vmatprep.subr.mxu0 0.0
    %v406 = vand.u32 %v117, 4294901760
    %v407 = vsub.f32 %v117, %v406
    %v408 = vand.u32 %v407, 4294901760
    %v409 = vsub.f32 %v407, %v408
    %v410 = vand.u32 %v409, 4294901760
    %411 = vmatpush1.xpose.msra.mxu0 %v410
    %412 = vmatprep.subr.mxu0 0.0
    %v413 = vand.u32 %v120, 4294901760
    %v414 = vsub.f32 %v120, %v413
    %v415 = vand.u32 %v414, 4294901760
    %v416 = vsub.f32 %v414, %v415
    %v417 = vand.u32 %v416, 4294901760
    %418 = vmatpush1.xpose.msra.mxu0 %v417
    %419 = vmatprep.subr.mxu0 0.0
    %v420 = vand.u32 %v123, 4294901760
    %v421 = vsub.f32 %v123, %v420
    %v422 = vand.u32 %v421, 4294901760
    %v423 = vsub.f32 %v421, %v422
    %v424 = vand.u32 %v423, 4294901760
    %425 = vmatpush1.xpose.msra.mxu0 %v424
    %426 = vmatprep.subr.mxu0 0.0
    %v427 = vand.u32 %v126, 4294901760
    %v428 = vsub.f32 %v126, %v427
    %v429 = vand.u32 %v428, 4294901760
    %v430 = vsub.f32 %v428, %v429
    %v431 = vand.u32 %v430, 4294901760
    %432 = vmatpush1.xpose.msra.mxu0 %v431
    %433 = vmatprep.subr.mxu0 0.0
    %v434 = vand.u32 %v129, 4294901760
    %v435 = vsub.f32 %v129, %v434
    %v436 = vand.u32 %v435, 4294901760
    %v437 = vsub.f32 %v435, %v436
    %v438 = vand.u32 %v437, 4294901760
    %439 = vmatpush1.xpose.msra.mxu0 %v438
    %440 = vmatprep.subr.mxu0 0.0
    %v441 = vand.u32 %v132, 4294901760
    %v442 = vsub.f32 %v132, %v441
    %v443 = vand.u32 %v442, 4294901760
    %v444 = vsub.f32 %v442, %v443
    %v445 = vand.u32 %v444, 4294901760
    %446 = vmatpush1.xpose.msra.mxu0 %v445
    %447 = vmatprep.subr.mxu0 0.0
    %v448 = vand.u32 %v135, 4294901760
    %v449 = vsub.f32 %v135, %v448
    %v450 = vand.u32 %v449, 4294901760
    %v451 = vsub.f32 %v449, %v450
    %v452 = vand.u32 %v451, 4294901760
    %453 = vmatpush1.xpose.msra.mxu0 %v452
    %454 = vmatprep.subr.mxu0 0.0
    %v455 = vand.u32 %v138, 4294901760
    %v456 = vsub.f32 %v138, %v455
    %v457 = vand.u32 %v456, 4294901760
    %v458 = vsub.f32 %v456, %v457
    %v459 = vand.u32 %v458, 4294901760
    %460 = vmatpush1.xpose.msra.mxu0 %v459
    %461 = vmatprep.subr.mxu0 0.0
    %v462 = vand.u32 %v141, 4294901760
    %v463 = vsub.f32 %v141, %v462
    %v464 = vand.u32 %v463, 4294901760
    %v465 = vsub.f32 %v463, %v464
    %v466 = vand.u32 %v465, 4294901760
    %467 = vmatpush1.xpose.msra.mxu0 %v466
    %468 = vmatprep.subr.mxu0 0.0
    %v469 = vand.u32 %v144, 4294901760
    %v470 = vsub.f32 %v144, %v469
    %v471 = vand.u32 %v470, 4294901760
    %v472 = vsub.f32 %v470, %v471
    %v473 = vand.u32 %v472, 4294901760
    %474 = vmatpush1.xpose.msra.mxu0 %v473
    %475 = vmatprep.subr.mxu0 0.0
    %v476 = vand.u32 %v147, 4294901760
    %v477 = vsub.f32 %v147, %v476
    %v478 = vand.u32 %v477, 4294901760
    %v479 = vsub.f32 %v477, %v478
    %v480 = vand.u32 %v479, 4294901760
    %481 = vmatpush1.xpose.msra.mxu0 %v480
    %482 = vmatprep.subr.mxu0 0.0
    %v483 = vand.u32 %v150, 4294901760
    %v484 = vsub.f32 %v150, %v483
    %v485 = vand.u32 %v484, 4294901760
    %v486 = vsub.f32 %v484, %v485
    %v487 = vand.u32 %v486, 4294901760
    %488 = vmatpush1.xpose.msra.mxu0 %v487
    %489 = vmatprep.subr.mxu0 0.0
    %v490 = vand.u32 %v153, 4294901760
    %v491 = vsub.f32 %v153, %v490
    %v492 = vand.u32 %v491, 4294901760
    %v493 = vsub.f32 %v491, %v492
    %v494 = vand.u32 %v493, 4294901760
    %495 = vmatpush1.xpose.msra.mxu0 %v494
    %496 = vmatprep.subr.mxu0 0.0
    %v497 = vand.u32 %v156, 4294901760
    %v498 = vsub.f32 %v156, %v497
    %v499 = vand.u32 %v498, 4294901760
    %v500 = vsub.f32 %v498, %v499
    %v501 = vand.u32 %v500, 4294901760
    %502 = vmatpush1.xpose.msra.mxu0 %v501
    %503 = vmatprep.subr.mxu0 0.0
    %v504 = vand.u32 %v159, 4294901760
    %v505 = vsub.f32 %v159, %v504
    %v506 = vand.u32 %v505, 4294901760
    %v507 = vsub.f32 %v505, %v506
    %v508 = vand.u32 %v507, 4294901760
    %509 = vmatpush1.xpose.msra.mxu0 %v508
    %510 = vmatprep.subr.mxu0 0.0
    %v511 = vand.u32 %v162, 4294901760
    %v512 = vsub.f32 %v162, %v511
    %v513 = vand.u32 %v512, 4294901760
    %v514 = vsub.f32 %v512, %v513
    %v515 = vand.u32 %v514, 4294901760
    %516 = vmatpush1.xpose.msra.mxu0 %v515
    %517 = vmatprep.subr.mxu0 0.0
    %v518 = vand.u32 %v165, 4294901760
    %v519 = vsub.f32 %v165, %v518
    %v520 = vand.u32 %v519, 4294901760
    %v521 = vsub.f32 %v519, %v520
    %v522 = vand.u32 %v521, 4294901760
    %523 = vmatpush1.xpose.msra.mxu0 %v522
    %524 = vmatprep.subr.mxu0 0.0
    %v525 = vand.u32 %v168, 4294901760
    %v526 = vsub.f32 %v168, %v525
    %v527 = vand.u32 %v526, 4294901760
    %v528 = vsub.f32 %v526, %v527
    %v529 = vand.u32 %v528, 4294901760
    %530 = vmatpush1.xpose.msra.mxu0 %v529
    %531 = vmatprep.subr.mxu0 0.0
    %v532 = vand.u32 %v171, 4294901760
    %v533 = vsub.f32 %v171, %v532
    %v534 = vand.u32 %v533, 4294901760
    %v535 = vsub.f32 %v533, %v534
    %v536 = vand.u32 %v535, 4294901760
    %537 = vmatpush1.xpose.msra.mxu0 %v536
    %538 = vmatprep.mubr.f32.mxu0 0.0
    %v539 = vand.u32 %v66, 4294901760
    %540 = vmatmul.mubr.f32.gmra.mrb[0].mxu0 %v539
    %v541 = vpop.f32.mrb[0].mxu0
    %v542 = vadd.f32 %v277, %v541
    %v543 = vpop.f32.mrb[0].mxu0
    %v544 = vadd.f32 %v279, %v543
    %545 = vmatprep.mubr.f32.mxu0 0.0
    %v546 = vand.u32 %v69, 4294901760
    %547 = vmatmul.mubr.f32.gmra.mrb[0].mxu0 %v546
    %v548 = vpop.f32.mrb[0].mxu0
    %v549 = vadd.f32 %v288, %v548
    %v550 = vpop.f32.mrb[0].mxu0
    %v551 = vadd.f32 %v290, %v550
    %552 = vmatprep.mubr.f32.mxu0 0.0
    %v553 = vand.u32 %v72, 4294901760
    %554 = vmatmul.mubr.f32.gmra.mrb[0].mxu0 %v553
    %v555 = vpop.f32.mrb[0].mxu0
    %v556 = vadd.f32 %v299, %v555
    %v557 = vpop.f32.mrb[0].mxu0
    %v558 = vadd.f32 %v301, %v557
    %559 = vmatprep.mubr.f32.mxu0 0.0
    %v560 = vand.u32 %v75, 4294901760
    %561 = vmatmul.mubr.f32.gmra.mrb[0].mxu0 %v560
    %v562 = vpop.f32.mrb[0].mxu0
    %v563 = vadd.f32 %v310, %v562
    %v564 = vpop.f32.mrb[0].mxu0
    %v565 = vadd.f32 %v312, %v564
    %566 = vdwg.mxu0
    %567 = vmatprep.subr.mxu0 0.0
    %v568 = vand.u32 %v78, 4294901760
    %v569 = vsub.f32 %v78, %v568
    %570 = vmatpush1.xpose.msra.mxu0 %v569
    %571 = vmatprep.subr.mxu0 0.0
    %v572 = vand.u32 %v81, 4294901760
    %v573 = vsub.f32 %v81, %v572
    %574 = vmatpush1.xpose.msra.mxu0 %v573
    %575 = vmatprep.subr.mxu0 0.0
    %v576 = vand.u32 %v84, 4294901760
    %v577 = vsub.f32 %v84, %v576
    %578 = vmatpush1.xpose.msra.mxu0 %v577
    %579 = vmatprep.subr.mxu0 0.0
    %v580 = vand.u32 %v87, 4294901760
    %v581 = vsub.f32 %v87, %v580
    %582 = vmatpush1.xpose.msra.mxu0 %v581
    %583 = vmatprep.subr.mxu0 0.0
    %v584 = vand.u32 %v90, 4294901760
    %v585 = vsub.f32 %v90, %v584
    %586 = vmatpush1.xpose.msra.mxu0 %v585
    %587 = vmatprep.subr.mxu0 0.0
    %v588 = vand.u32 %v93, 4294901760
    %v589 = vsub.f32 %v93, %v588
    %590 = vmatpush1.xpose.msra.mxu0 %v589
    %591 = vmatprep.subr.mxu0 0.0
    %v592 = vand.u32 %v96, 4294901760
    %v593 = vsub.f32 %v96, %v592
    %594 = vmatpush1.xpose.msra.mxu0 %v593
    %595 = vmatprep.subr.mxu0 0.0
    %v596 = vand.u32 %v99, 4294901760
    %v597 = vsub.f32 %v99, %v596
    %598 = vmatpush1.xpose.msra.mxu0 %v597
    %599 = vmatprep.subr.mxu0 0.0
    %v600 = vand.u32 %v102, 4294901760
    %v601 = vsub.f32 %v102, %v600
    %602 = vmatpush1.xpose.msra.mxu0 %v601
    %603 = vmatprep.subr.mxu0 0.0
    %v604 = vand.u32 %v105, 4294901760
    %v605 = vsub.f32 %v105, %v604
    %606 = vmatpush1.xpose.msra.mxu0 %v605
    %607 = vmatprep.subr.mxu0 0.0
    %v608 = vand.u32 %v108, 4294901760
    %v609 = vsub.f32 %v108, %v608
    %610 = vmatpush1.xpose.msra.mxu0 %v609
    %611 = vmatprep.subr.mxu0 0.0
    %v612 = vand.u32 %v111, 4294901760
    %v613 = vsub.f32 %v111, %v612
    %614 = vmatpush1.xpose.msra.mxu0 %v613
    %615 = vmatprep.subr.mxu0 0.0
    %v616 = vand.u32 %v114, 4294901760
    %v617 = vsub.f32 %v114, %v616
    %618 = vmatpush1.xpose.msra.mxu0 %v617
    %619 = vmatprep.subr.mxu0 0.0
    %v620 = vand.u32 %v117, 4294901760
    %v621 = vsub.f32 %v117, %v620
    %622 = vmatpush1.xpose.msra.mxu0 %v621
    %623 = vmatprep.subr.mxu0 0.0
    %v624 = vand.u32 %v120, 4294901760
    %v625 = vsub.f32 %v120, %v624
    %626 = vmatpush1.xpose.msra.mxu0 %v625
    %627 = vmatprep.subr.mxu0 0.0
    %v628 = vand.u32 %v123, 4294901760
    %v629 = vsub.f32 %v123, %v628
    %630 = vmatpush1.xpose.msra.mxu0 %v629
    %631 = vmatprep.subr.mxu0 0.0
    %v632 = vand.u32 %v126, 4294901760
    %v633 = vsub.f32 %v126, %v632
    %634 = vmatpush1.xpose.msra.mxu0 %v633
    %635 = vmatprep.subr.mxu0 0.0
    %v636 = vand.u32 %v129, 4294901760
    %v637 = vsub.f32 %v129, %v636
    %638 = vmatpush1.xpose.msra.mxu0 %v637
    %639 = vmatprep.subr.mxu0 0.0
    %v640 = vand.u32 %v132, 4294901760
    %v641 = vsub.f32 %v132, %v640
    %642 = vmatpush1.xpose.msra.mxu0 %v641
    %643 = vmatprep.subr.mxu0 0.0
    %v644 = vand.u32 %v135, 4294901760
    %v645 = vsub.f32 %v135, %v644
    %646 = vmatpush1.xpose.msra.mxu0 %v645
    %647 = vmatprep.subr.mxu0 0.0
    %v648 = vand.u32 %v138, 4294901760
    %v649 = vsub.f32 %v138, %v648
    %650 = vmatpush1.xpose.msra.mxu0 %v649
    %651 = vmatprep.subr.mxu0 0.0
    %v652 = vand.u32 %v141, 4294901760
    %v653 = vsub.f32 %v141, %v652
    %654 = vmatpush1.xpose.msra.mxu0 %v653
    %655 = vmatprep.subr.mxu0 0.0
    %v656 = vand.u32 %v144, 4294901760
    %v657 = vsub.f32 %v144, %v656
    %658 = vmatpush1.xpose.msra.mxu0 %v657
    %659 = vmatprep.subr.mxu0 0.0
    %v660 = vand.u32 %v147, 4294901760
    %v661 = vsub.f32 %v147, %v660
    %662 = vmatpush1.xpose.msra.mxu0 %v661
    %663 = vmatprep.subr.mxu0 0.0
    %v664 = vand.u32 %v150, 4294901760
    %v665 = vsub.f32 %v150, %v664
    %666 = vmatpush1.xpose.msra.mxu0 %v665
    %667 = vmatprep.subr.mxu0 0.0
    %v668 = vand.u32 %v153, 4294901760
    %v669 = vsub.f32 %v153, %v668
    %670 = vmatpush1.xpose.msra.mxu0 %v669
    %671 = vmatprep.subr.mxu0 0.0
    %v672 = vand.u32 %v156, 4294901760
    %v673 = vsub.f32 %v156, %v672
    %674 = vmatpush1.xpose.msra.mxu0 %v673
    %675 = vmatprep.subr.mxu0 0.0
    %v676 = vand.u32 %v159, 4294901760
    %v677 = vsub.f32 %v159, %v676
    %678 = vmatpush1.xpose.msra.mxu0 %v677
    %679 = vmatprep.subr.mxu0 0.0
    %v680 = vand.u32 %v162, 4294901760
    %v681 = vsub.f32 %v162, %v680
    %682 = vmatpush1.xpose.msra.mxu0 %v681
    %683 = vmatprep.subr.mxu0 0.0
    %v684 = vand.u32 %v165, 4294901760
    %v685 = vsub.f32 %v165, %v684
    %686 = vmatpush1.xpose.msra.mxu0 %v685
    %687 = vmatprep.subr.mxu0 0.0
    %v688 = vand.u32 %v168, 4294901760
    %v689 = vsub.f32 %v168, %v688
    %690 = vmatpush1.xpose.msra.mxu0 %v689
    %691 = vmatprep.subr.mxu0 0.0
    %v692 = vand.u32 %v171, 4294901760
    %v693 = vsub.f32 %v171, %v692
    %694 = vmatpush1.xpose.msra.mxu0 %v693
    %695 = vmatprep.mubr.f32.mxu0 0.0
    %v696 = vand.u32 %v66, 4294901760
    %v697 = vsub.f32 %v66, %v696
    %698 = vmatmul.mubr.f32.gmra.mrb[0].mxu0 %v697
    %v699 = vpop.f32.mrb[0].mxu0
    %v700 = vadd.f32 %v542, %v699
    %v701 = vpop.f32.mrb[0].mxu0
    %v702 = vadd.f32 %v544, %v701
    %703 = vmatprep.mubr.f32.mxu0 0.0
    %v704 = vand.u32 %v69, 4294901760
    %v705 = vsub.f32 %v69, %v704
    %706 = vmatmul.mubr.f32.gmra.mrb[0].mxu0 %v705
    %v707 = vpop.f32.mrb[0].mxu0
    %v708 = vadd.f32 %v549, %v707
    %v709 = vpop.f32.mrb[0].mxu0
    %v710 = vadd.f32 %v551, %v709
    %711 = vmatprep.mubr.f32.mxu0 0.0
    %v712 = vand.u32 %v72, 4294901760
    %v713 = vsub.f32 %v72, %v712
    %714 = vmatmul.mubr.f32.gmra.mrb[0].mxu0 %v713
    %v715 = vpop.f32.mrb[0].mxu0
    %v716 = vadd.f32 %v556, %v715
    %v717 = vpop.f32.mrb[0].mxu0
    %v718 = vadd.f32 %v558, %v717
    %719 = vmatprep.mubr.f32.mxu0 0.0
    %v720 = vand.u32 %v75, 4294901760
    %v721 = vsub.f32 %v75, %v720
    %722 = vmatmul.mubr.f32.gmra.mrb[0].mxu0 %v721
    %v723 = vpop.f32.mrb[0].mxu0
    %v724 = vadd.f32 %v563, %v723
    %v725 = vpop.f32.mrb[0].mxu0
    %v726 = vadd.f32 %v565, %v725
    %727 = vdwg.mxu0
    %728 = vmatprep.subr.mxu0 0.0
    %v729 = vand.u32 %v78, 4294901760
    %730 = vmatpush1.xpose.msra.mxu0 %v729
    %731 = vmatprep.subr.mxu0 0.0
    %v732 = vand.u32 %v81, 4294901760
    %733 = vmatpush1.xpose.msra.mxu0 %v732
    %734 = vmatprep.subr.mxu0 0.0
    %v735 = vand.u32 %v84, 4294901760
    %736 = vmatpush1.xpose.msra.mxu0 %v735
    %737 = vmatprep.subr.mxu0 0.0
    %v738 = vand.u32 %v87, 4294901760
    %739 = vmatpush1.xpose.msra.mxu0 %v738
    %740 = vmatprep.subr.mxu0 0.0
    %v741 = vand.u32 %v90, 4294901760
    %742 = vmatpush1.xpose.msra.mxu0 %v741
    %743 = vmatprep.subr.mxu0 0.0
    %v744 = vand.u32 %v93, 4294901760
    %745 = vmatpush1.xpose.msra.mxu0 %v744
    %746 = vmatprep.subr.mxu0 0.0
    %v747 = vand.u32 %v96, 4294901760
    %748 = vmatpush1.xpose.msra.mxu0 %v747
    %749 = vmatprep.subr.mxu0 0.0
    %v750 = vand.u32 %v99, 4294901760
    %751 = vmatpush1.xpose.msra.mxu0 %v750
    %752 = vmatprep.subr.mxu0 0.0
    %v753 = vand.u32 %v102, 4294901760
    %754 = vmatpush1.xpose.msra.mxu0 %v753
    %755 = vmatprep.subr.mxu0 0.0
    %v756 = vand.u32 %v105, 4294901760
    %757 = vmatpush1.xpose.msra.mxu0 %v756
    %758 = vmatprep.subr.mxu0 0.0
    %v759 = vand.u32 %v108, 4294901760
    %760 = vmatpush1.xpose.msra.mxu0 %v759
    %761 = vmatprep.subr.mxu0 0.0
    %v762 = vand.u32 %v111, 4294901760
    %763 = vmatpush1.xpose.msra.mxu0 %v762
    %764 = vmatprep.subr.mxu0 0.0
    %v765 = vand.u32 %v114, 4294901760
    %766 = vmatpush1.xpose.msra.mxu0 %v765
    %767 = vmatprep.subr.mxu0 0.0
    %v768 = vand.u32 %v117, 4294901760
    %769 = vmatpush1.xpose.msra.mxu0 %v768
    %770 = vmatprep.subr.mxu0 0.0
    %v771 = vand.u32 %v120, 4294901760
    %772 = vmatpush1.xpose.msra.mxu0 %v771
    %773 = vmatprep.subr.mxu0 0.0
    %v774 = vand.u32 %v123, 4294901760
    %775 = vmatpush1.xpose.msra.mxu0 %v774
    %776 = vmatprep.subr.mxu0 0.0
    %v777 = vand.u32 %v126, 4294901760
    %778 = vmatpush1.xpose.msra.mxu0 %v777
    %779 = vmatprep.subr.mxu0 0.0
    %v780 = vand.u32 %v129, 4294901760
    %781 = vmatpush1.xpose.msra.mxu0 %v780
    %782 = vmatprep.subr.mxu0 0.0
    %v783 = vand.u32 %v132, 4294901760
    %784 = vmatpush1.xpose.msra.mxu0 %v783
    %785 = vmatprep.subr.mxu0 0.0
    %v786 = vand.u32 %v135, 4294901760
    %787 = vmatpush1.xpose.msra.mxu0 %v786
    %788 = vmatprep.subr.mxu0 0.0
    %v789 = vand.u32 %v138, 4294901760
    %790 = vmatpush1.xpose.msra.mxu0 %v789
    %791 = vmatprep.subr.mxu0 0.0
    %v792 = vand.u32 %v141, 4294901760
    %793 = vmatpush1.xpose.msra.mxu0 %v792
    %794 = vmatprep.subr.mxu0 0.0
    %v795 = vand.u32 %v144, 4294901760
    %796 = vmatpush1.xpose.msra.mxu0 %v795
    %797 = vmatprep.subr.mxu0 0.0
    %v798 = vand.u32 %v147, 4294901760
    %799 = vmatpush1.xpose.msra.mxu0 %v798
    %800 = vmatprep.subr.mxu0 0.0
    %v801 = vand.u32 %v150, 4294901760
    %802 = vmatpush1.xpose.msra.mxu0 %v801
    %803 = vmatprep.subr.mxu0 0.0
    %v804 = vand.u32 %v153, 4294901760
    %805 = vmatpush1.xpose.msra.mxu0 %v804
    %806 = vmatprep.subr.mxu0 0.0
    %v807 = vand.u32 %v156, 4294901760
    %808 = vmatpush1.xpose.msra.mxu0 %v807
    %809 = vmatprep.subr.mxu0 0.0
    %v810 = vand.u32 %v159, 4294901760
    %811 = vmatpush1.xpose.msra.mxu0 %v810
    %812 = vmatprep.subr.mxu0 0.0
    %v813 = vand.u32 %v162, 4294901760
    %814 = vmatpush1.xpose.msra.mxu0 %v813
    %815 = vmatprep.subr.mxu0 0.0
    %v816 = vand.u32 %v165, 4294901760
    %817 = vmatpush1.xpose.msra.mxu0 %v816
    %818 = vmatprep.subr.mxu0 0.0
    %v819 = vand.u32 %v168, 4294901760
    %820 = vmatpush1.xpose.msra.mxu0 %v819
    %821 = vmatprep.subr.mxu0 0.0
    %v822 = vand.u32 %v171, 4294901760
    %823 = vmatpush1.xpose.msra.mxu0 %v822
    %824 = vmatprep.mubr.f32.mxu0 0.0
    %v825 = vand.u32 %v66, 4294901760
    %v826 = vsub.f32 %v66, %v825
    %v827 = vand.u32 %v826, 4294901760
    %828 = vmatmul.mubr.f32.gmra.mrb[0].mxu0 %v827
    %v829 = vpop.f32.mrb[0].mxu0
    %v830 = vadd.f32 %v700, %v829
    %v831 = vpop.f32.mrb[0].mxu0
    %v832 = vadd.f32 %v702, %v831
    %833 = vmatprep.mubr.f32.mxu0 0.0
    %v834 = vand.u32 %v69, 4294901760
    %v835 = vsub.f32 %v69, %v834
    %v836 = vand.u32 %v835, 4294901760
    %837 = vmatmul.mubr.f32.gmra.mrb[0].mxu0 %v836
    %v838 = vpop.f32.mrb[0].mxu0
    %v839 = vadd.f32 %v708, %v838
    %v840 = vpop.f32.mrb[0].mxu0
    %v841 = vadd.f32 %v710, %v840
    %842 = vmatprep.mubr.f32.mxu0 0.0
    %v843 = vand.u32 %v72, 4294901760
    %v844 = vsub.f32 %v72, %v843
    %v845 = vand.u32 %v844, 4294901760
    %846 = vmatmul.mubr.f32.gmra.mrb[0].mxu0 %v845
    %v847 = vpop.f32.mrb[0].mxu0
    %v848 = vadd.f32 %v716, %v847
    %v849 = vpop.f32.mrb[0].mxu0
    %v850 = vadd.f32 %v718, %v849
    %851 = vmatprep.mubr.f32.mxu0 0.0
    %v852 = vand.u32 %v75, 4294901760
    %v853 = vsub.f32 %v75, %v852
    %v854 = vand.u32 %v853, 4294901760
    %855 = vmatmul.mubr.f32.gmra.mrb[0].mxu0 %v854
    %v856 = vpop.f32.mrb[0].mxu0
    %v857 = vadd.f32 %v724, %v856
    %v858 = vpop.f32.mrb[0].mxu0
    %v859 = vadd.f32 %v726, %v858
    %860 = vdwg.mxu0
    %861 = vmatprep.subr.mxu0 0.0
    %v862 = vand.u32 %v78, 4294901760
    %v863 = vsub.f32 %v78, %v862
    %v864 = vand.u32 %v863, 4294901760
    %865 = vmatpush1.xpose.msra.mxu0 %v864
    %866 = vmatprep.subr.mxu0 0.0
    %v867 = vand.u32 %v81, 4294901760
    %v868 = vsub.f32 %v81, %v867
    %v869 = vand.u32 %v868, 4294901760
    %870 = vmatpush1.xpose.msra.mxu0 %v869
    %871 = vmatprep.subr.mxu0 0.0
    %v872 = vand.u32 %v84, 4294901760
    %v873 = vsub.f32 %v84, %v872
    %v874 = vand.u32 %v873, 4294901760
    %875 = vmatpush1.xpose.msra.mxu0 %v874
    %876 = vmatprep.subr.mxu0 0.0
    %v877 = vand.u32 %v87, 4294901760
    %v878 = vsub.f32 %v87, %v877
    %v879 = vand.u32 %v878, 4294901760
    %880 = vmatpush1.xpose.msra.mxu0 %v879
    %881 = vmatprep.subr.mxu0 0.0
    %v882 = vand.u32 %v90, 4294901760
    %v883 = vsub.f32 %v90, %v882
    %v884 = vand.u32 %v883, 4294901760
    %885 = vmatpush1.xpose.msra.mxu0 %v884
    %886 = vmatprep.subr.mxu0 0.0
    %v887 = vand.u32 %v93, 4294901760
    %v888 = vsub.f32 %v93, %v887
    %v889 = vand.u32 %v888, 4294901760
    %890 = vmatpush1.xpose.msra.mxu0 %v889
    %891 = vmatprep.subr.mxu0 0.0
    %v892 = vand.u32 %v96, 4294901760
    %v893 = vsub.f32 %v96, %v892
    %v894 = vand.u32 %v893, 4294901760
    %895 = vmatpush1.xpose.msra.mxu0 %v894
    %896 = vmatprep.subr.mxu0 0.0
    %v897 = vand.u32 %v99, 4294901760
    %v898 = vsub.f32 %v99, %v897
    %v899 = vand.u32 %v898, 4294901760
    %900 = vmatpush1.xpose.msra.mxu0 %v899
    %901 = vmatprep.subr.mxu0 0.0
    %v902 = vand.u32 %v102, 4294901760
    %v903 = vsub.f32 %v102, %v902
    %v904 = vand.u32 %v903, 4294901760
    %905 = vmatpush1.xpose.msra.mxu0 %v904
    %906 = vmatprep.subr.mxu0 0.0
    %v907 = vand.u32 %v105, 4294901760
    %v908 = vsub.f32 %v105, %v907
    %v909 = vand.u32 %v908, 4294901760
    %910 = vmatpush1.xpose.msra.mxu0 %v909
    %911 = vmatprep.subr.mxu0 0.0
    %v912 = vand.u32 %v108, 4294901760
    %v913 = vsub.f32 %v108, %v912
    %v914 = vand.u32 %v913, 4294901760
    %915 = vmatpush1.xpose.msra.mxu0 %v914
    %916 = vmatprep.subr.mxu0 0.0
    %v917 = vand.u32 %v111, 4294901760
    %v918 = vsub.f32 %v111, %v917
    %v919 = vand.u32 %v918, 4294901760
    %920 = vmatpush1.xpose.msra.mxu0 %v919
    %921 = vmatprep.subr.mxu0 0.0
    %v922 = vand.u32 %v114, 4294901760
    %v923 = vsub.f32 %v114, %v922
    %v924 = vand.u32 %v923, 4294901760
    %925 = vmatpush1.xpose.msra.mxu0 %v924
    %926 = vmatprep.subr.mxu0 0.0
    %v927 = vand.u32 %v117, 4294901760
    %v928 = vsub.f32 %v117, %v927
    %v929 = vand.u32 %v928, 4294901760
    %930 = vmatpush1.xpose.msra.mxu0 %v929
    %931 = vmatprep.subr.mxu0 0.0
    %v932 = vand.u32 %v120, 4294901760
    %v933 = vsub.f32 %v120, %v932
    %v934 = vand.u32 %v933, 4294901760
    %935 = vmatpush1.xpose.msra.mxu0 %v934
    %936 = vmatprep.subr.mxu0 0.0
    %v937 = vand.u32 %v123, 4294901760
    %v938 = vsub.f32 %v123, %v937
    %v939 = vand.u32 %v938, 4294901760
    %940 = vmatpush1.xpose.msra.mxu0 %v939
    %941 = vmatprep.subr.mxu0 0.0
    %v942 = vand.u32 %v126, 4294901760
    %v943 = vsub.f32 %v126, %v942
    %v944 = vand.u32 %v943, 4294901760
    %945 = vmatpush1.xpose.msra.mxu0 %v944
    %946 = vmatprep.subr.mxu0 0.0
    %v947 = vand.u32 %v129, 4294901760
    %v948 = vsub.f32 %v129, %v947
    %v949 = vand.u32 %v948, 4294901760
    %950 = vmatpush1.xpose.msra.mxu0 %v949
    %951 = vmatprep.subr.mxu0 0.0
    %v952 = vand.u32 %v132, 4294901760
    %v953 = vsub.f32 %v132, %v952
    %v954 = vand.u32 %v953, 4294901760
    %955 = vmatpush1.xpose.msra.mxu0 %v954
    %956 = vmatprep.subr.mxu0 0.0
    %v957 = vand.u32 %v135, 4294901760
    %v958 = vsub.f32 %v135, %v957
    %v959 = vand.u32 %v958, 4294901760
    %960 = vmatpush1.xpose.msra.mxu0 %v959
    %961 = vmatprep.subr.mxu0 0.0
    %v962 = vand.u32 %v138, 4294901760
    %v963 = vsub.f32 %v138, %v962
    %v964 = vand.u32 %v963, 4294901760
    %965 = vmatpush1.xpose.msra.mxu0 %v964
    %966 = vmatprep.subr.mxu0 0.0
    %v967 = vand.u32 %v141, 4294901760
    %v968 = vsub.f32 %v141, %v967
    %v969 = vand.u32 %v968, 4294901760
    %970 = vmatpush1.xpose.msra.mxu0 %v969
    %971 = vmatprep.subr.mxu0 0.0
    %v972 = vand.u32 %v144, 4294901760
    %v973 = vsub.f32 %v144, %v972
    %v974 = vand.u32 %v973, 4294901760
    %975 = vmatpush1.xpose.msra.mxu0 %v974
    %976 = vmatprep.subr.mxu0 0.0
    %v977 = vand.u32 %v147, 4294901760
    %v978 = vsub.f32 %v147, %v977
    %v979 = vand.u32 %v978, 4294901760
    %980 = vmatpush1.xpose.msra.mxu0 %v979
    %981 = vmatprep.subr.mxu0 0.0
    %v982 = vand.u32 %v150, 4294901760
    %v983 = vsub.f32 %v150, %v982
    %v984 = vand.u32 %v983, 4294901760
    %985 = vmatpush1.xpose.msra.mxu0 %v984
    %986 = vmatprep.subr.mxu0 0.0
    %v987 = vand.u32 %v153, 4294901760
    %v988 = vsub.f32 %v153, %v987
    %v989 = vand.u32 %v988, 4294901760
    %990 = vmatpush1.xpose.msra.mxu0 %v989
    %991 = vmatprep.subr.mxu0 0.0
    %v992 = vand.u32 %v156, 4294901760
    %v993 = vsub.f32 %v156, %v992
    %v994 = vand.u32 %v993, 4294901760
    %995 = vmatpush1.xpose.msra.mxu0 %v994
    %996 = vmatprep.subr.mxu0 0.0
    %v997 = vand.u32 %v159, 4294901760
    %v998 = vsub.f32 %v159, %v997
    %v999 = vand.u32 %v998, 4294901760
    %1000 = vmatpush1.xpose.msra.mxu0 %v999
    %1001 = vmatprep.subr.mxu0 0.0
    %v1002 = vand.u32 %v162, 4294901760
    %v1003 = vsub.f32 %v162, %v1002
    %v1004 = vand.u32 %v1003, 4294901760
    %1005 = vmatpush1.xpose.msra.mxu0 %v1004
    %1006 = vmatprep.subr.mxu0 0.0
    %v1007 = vand.u32 %v165, 4294901760
    %v1008 = vsub.f32 %v165, %v1007
    %v1009 = vand.u32 %v1008, 4294901760
    %1010 = vmatpush1.xpose.msra.mxu0 %v1009
    %1011 = vmatprep.subr.mxu0 0.0
    %v1012 = vand.u32 %v168, 4294901760
    %v1013 = vsub.f32 %v168, %v1012
    %v1014 = vand.u32 %v1013, 4294901760
    %1015 = vmatpush1.xpose.msra.mxu0 %v1014
    %1016 = vmatprep.subr.mxu0 0.0
    %v1017 = vand.u32 %v171, 4294901760
    %v1018 = vsub.f32 %v171, %v1017
    %v1019 = vand.u32 %v1018, 4294901760
    %1020 = vmatpush1.xpose.msra.mxu0 %v1019
    %1021 = vmatprep.mubr.f32.mxu0 0.0
    %v1022 = vand.u32 %v66, 4294901760
    %1023 = vmatmul.mubr.f32.gmra.mrb[0].mxu0 %v1022
    %v1024 = vpop.f32.mrb[0].mxu0
    %v1025 = vadd.f32 %v830, %v1024
    %v1026 = vpop.f32.mrb[0].mxu0
    %v1027 = vadd.f32 %v832, %v1026
    %1028 = vmatprep.mubr.f32.mxu0 0.0
    %v1029 = vand.u32 %v69, 4294901760
    %1030 = vmatmul.mubr.f32.gmra.mrb[0].mxu0 %v1029
    %v1031 = vpop.f32.mrb[0].mxu0
    %v1032 = vadd.f32 %v839, %v1031
    %v1033 = vpop.f32.mrb[0].mxu0
    %v1034 = vadd.f32 %v841, %v1033
    %1035 = vmatprep.mubr.f32.mxu0 0.0
    %v1036 = vand.u32 %v72, 4294901760
    %1037 = vmatmul.mubr.f32.gmra.mrb[0].mxu0 %v1036
    %v1038 = vpop.f32.mrb[0].mxu0
    %v1039 = vadd.f32 %v848, %v1038
    %v1040 = vpop.f32.mrb[0].mxu0
    %v1041 = vadd.f32 %v850, %v1040
    %1042 = vmatprep.mubr.f32.mxu0 0.0
    %v1043 = vand.u32 %v75, 4294901760
    %1044 = vmatmul.mubr.f32.gmra.mrb[0].mxu0 %v1043
    %v1045 = vpop.f32.mrb[0].mxu0
    %v1046 = vadd.f32 %v857, %v1045
    %v1047 = vpop.f32.mrb[0].mxu0
    %v1048 = vadd.f32 %v859, %v1047
    %1049 = vdwg.mxu0
    %1050 = vmatprep.subr.mxu0 0.0
    %v1051 = vand.u32 %v78, 4294901760
    %1052 = vmatpush1.xpose.msra.mxu0 %v1051
    %1053 = vmatprep.subr.mxu0 0.0
    %v1054 = vand.u32 %v81, 4294901760
    %1055 = vmatpush1.xpose.msra.mxu0 %v1054
    %1056 = vmatprep.subr.mxu0 0.0
    %v1057 = vand.u32 %v84, 4294901760
    %1058 = vmatpush1.xpose.msra.mxu0 %v1057
    %1059 = vmatprep.subr.mxu0 0.0
    %v1060 = vand.u32 %v87, 4294901760
    %1061 = vmatpush1.xpose.msra.mxu0 %v1060
    %1062 = vmatprep.subr.mxu0 0.0
    %v1063 = vand.u32 %v90, 4294901760
    %1064 = vmatpush1.xpose.msra.mxu0 %v1063
    %1065 = vmatprep.subr.mxu0 0.0
    %v1066 = vand.u32 %v93, 4294901760
    %1067 = vmatpush1.xpose.msra.mxu0 %v1066
    %1068 = vmatprep.subr.mxu0 0.0
    %v1069 = vand.u32 %v96, 4294901760
    %1070 = vmatpush1.xpose.msra.mxu0 %v1069
    %1071 = vmatprep.subr.mxu0 0.0
    %v1072 = vand.u32 %v99, 4294901760
    %1073 = vmatpush1.xpose.msra.mxu0 %v1072
    %1074 = vmatprep.subr.mxu0 0.0
    %v1075 = vand.u32 %v102, 4294901760
    %1076 = vmatpush1.xpose.msra.mxu0 %v1075
    %1077 = vmatprep.subr.mxu0 0.0
    %v1078 = vand.u32 %v105, 4294901760
    %1079 = vmatpush1.xpose.msra.mxu0 %v1078
    %1080 = vmatprep.subr.mxu0 0.0
    %v1081 = vand.u32 %v108, 4294901760
    %1082 = vmatpush1.xpose.msra.mxu0 %v1081
    %1083 = vmatprep.subr.mxu0 0.0
    %v1084 = vand.u32 %v111, 4294901760
    %1085 = vmatpush1.xpose.msra.mxu0 %v1084
    %1086 = vmatprep.subr.mxu0 0.0
    %v1087 = vand.u32 %v114, 4294901760
    %1088 = vmatpush1.xpose.msra.mxu0 %v1087
    %1089 = vmatprep.subr.mxu0 0.0
    %v1090 = vand.u32 %v117, 4294901760
    %1091 = vmatpush1.xpose.msra.mxu0 %v1090
    %1092 = vmatprep.subr.mxu0 0.0
    %v1093 = vand.u32 %v120, 4294901760
    %1094 = vmatpush1.xpose.msra.mxu0 %v1093
    %1095 = vmatprep.subr.mxu0 0.0
    %v1096 = vand.u32 %v123, 4294901760
    %1097 = vmatpush1.xpose.msra.mxu0 %v1096
    %1098 = vmatprep.subr.mxu0 0.0
    %v1099 = vand.u32 %v126, 4294901760
    %1100 = vmatpush1.xpose.msra.mxu0 %v1099
    %1101 = vmatprep.subr.mxu0 0.0
    %v1102 = vand.u32 %v129, 4294901760
    %1103 = vmatpush1.xpose.msra.mxu0 %v1102
    %1104 = vmatprep.subr.mxu0 0.0
    %v1105 = vand.u32 %v132, 4294901760
    %1106 = vmatpush1.xpose.msra.mxu0 %v1105
    %1107 = vmatprep.subr.mxu0 0.0
    %v1108 = vand.u32 %v135, 4294901760
    %1109 = vmatpush1.xpose.msra.mxu0 %v1108
    %1110 = vmatprep.subr.mxu0 0.0
    %v1111 = vand.u32 %v138, 4294901760
    %1112 = vmatpush1.xpose.msra.mxu0 %v1111
    %1113 = vmatprep.subr.mxu0 0.0
    %v1114 = vand.u32 %v141, 4294901760
    %1115 = vmatpush1.xpose.msra.mxu0 %v1114
    %1116 = vmatprep.subr.mxu0 0.0
    %v1117 = vand.u32 %v144, 4294901760
    %1118 = vmatpush1.xpose.msra.mxu0 %v1117
    %1119 = vmatprep.subr.mxu0 0.0
    %v1120 = vand.u32 %v147, 4294901760
    %1121 = vmatpush1.xpose.msra.mxu0 %v1120
    %1122 = vmatprep.subr.mxu0 0.0
    %v1123 = vand.u32 %v150, 4294901760
    %1124 = vmatpush1.xpose.msra.mxu0 %v1123
    %1125 = vmatprep.subr.mxu0 0.0
    %v1126 = vand.u32 %v153, 4294901760
    %1127 = vmatpush1.xpose.msra.mxu0 %v1126
    %1128 = vmatprep.subr.mxu0 0.0
    %v1129 = vand.u32 %v156, 4294901760
    %1130 = vmatpush1.xpose.msra.mxu0 %v1129
    %1131 = vmatprep.subr.mxu0 0.0
    %v1132 = vand.u32 %v159, 4294901760
    %1133 = vmatpush1.xpose.msra.mxu0 %v1132
    %1134 = vmatprep.subr.mxu0 0.0
    %v1135 = vand.u32 %v162, 4294901760
    %1136 = vmatpush1.xpose.msra.mxu0 %v1135
    %1137 = vmatprep.subr.mxu0 0.0
    %v1138 = vand.u32 %v165, 4294901760
    %1139 = vmatpush1.xpose.msra.mxu0 %v1138
    %1140 = vmatprep.subr.mxu0 0.0
    %v1141 = vand.u32 %v168, 4294901760
    %1142 = vmatpush1.xpose.msra.mxu0 %v1141
    %1143 = vmatprep.subr.mxu0 0.0
    %v1144 = vand.u32 %v171, 4294901760
    %1145 = vmatpush1.xpose.msra.mxu0 %v1144
    %1146 = vmatprep.mubr.f32.mxu0 0.0
    %v1147 = vand.u32 %v66, 4294901760
    %1148 = vmatmul.mubr.f32.gmra.mrb[0].mxu0 %v1147
    %v1149 = vpop.f32.mrb[0].mxu0
    %v1150 = vadd.f32 %v1025, %v1149
    %v1151 = vpop.f32.mrb[0].mxu0
    %v1152 = vadd.f32 %v1027, %v1151
    %1153 = vmatprep.mubr.f32.mxu0 0.0
    %v1154 = vand.u32 %v69, 4294901760
    %1155 = vmatmul.mubr.f32.gmra.mrb[0].mxu0 %v1154
    %v1156 = vpop.f32.mrb[0].mxu0
    %v1157 = vadd.f32 %v1032, %v1156
    %v1158 = vpop.f32.mrb[0].mxu0
    %v1159 = vadd.f32 %v1034, %v1158
    %1160 = vmatprep.mubr.f32.mxu0 0.0
    %v1161 = vand.u32 %v72, 4294901760
    %1162 = vmatmul.mubr.f32.gmra.mrb[0].mxu0 %v1161
    %v1163 = vpop.f32.mrb[0].mxu0
    %v1164 = vadd.f32 %v1039, %v1163
    %v1165 = vpop.f32.mrb[0].mxu0
    %v1166 = vadd.f32 %v1041, %v1165
    %1167 = vmatprep.mubr.f32.mxu0 0.0
    %v1168 = vand.u32 %v75, 4294901760
    %1169 = vmatmul.mubr.f32.gmra.mrb[0].mxu0 %v1168
    %v1170 = vpop.f32.mrb[0].mxu0
    %v1171 = vadd.f32 %v1046, %v1170
    %v1172 = vpop.f32.mrb[0].mxu0
    %v1173 = vadd.f32 %v1048, %v1172
    %1174 = vdwg.mxu0
    %s1175 = sld [smem:[#allocation2]]
    %v1176 = vstv %s1175
    %v1177 = vadd.f32 %v1176, %v1171
    %v1178 = vadd.f32 %v1176, %v1173
    %v1179 = vmul.f32 %v1150, %v1150
    %v1180 = vmul.f32 %v1152, %v1152
    %v1181 = vrot.slane %v1179, 4
    %v1182 = vadd.f32 %v1179, %v1181
    %v1183 = vrot.slane %v1182, 2
    %v1184 = vadd.f32 %v1182, %v1183
    %v1185 = vrot.slane %v1184, 1
    %v1186 = vadd.f32 %v1184, %v1185
    %v1187 = vrot.slane %v1180, 4
    %v1188 = vadd.f32 %v1180, %v1187
    %v1189 = vrot.slane %v1188, 2
    %v1190 = vadd.f32 %v1188, %v1189
    %v1191 = vrot.slane %v1190, 1
    %v1192 = vadd.f32 %v1190, %v1191
    %v1193 = vmul.f32 %v1186, 0.5
    %v1194 = vmul.f32 %v1192, 0.5
    %v1195 = vsub.f32 %v1177, %v1193
    %v1196 = vsub.f32 %v1178, %v1194
    %s1197 = sld [smem:[#allocation2 + $0x1]]
    %v1198 = vstv %s1197
    %v1199 = vadd.f32 %v1198, %v1171
    %v1200 = vadd.f32 %v1198, %v1173
    %v1201 = vmul.f32 %v1157, %v1157
    %v1202 = vmul.f32 %v1159, %v1159
    %v1203 = vrot.slane %v1201, 4
    %v1204 = vadd.f32 %v1201, %v1203
    %v1205 = vrot.slane %v1204, 2
    %v1206 = vadd.f32 %v1204, %v1205
    %v1207 = vrot.slane %v1206, 1
    %v1208 = vadd.f32 %v1206, %v1207
    %v1209 = vrot.slane %v1202, 4
    %v1210 = vadd.f32 %v1202, %v1209
    %v1211 = vrot.slane %v1210, 2
    %v1212 = vadd.f32 %v1210, %v1211
    %v1213 = vrot.slane %v1212, 1
    %v1214 = vadd.f32 %v1212, %v1213
    %v1215 = vmul.f32 %v1208, 0.5
    %v1216 = vmul.f32 %v1214, 0.5
    %v1217 = vsub.f32 %v1199, %v1215
    %v1218 = vsub.f32 %v1200, %v1216
    %v1221 = vrot.slane %v1217, 1
    %v1222 = vrot.slane %v1218, 1
    %v1225 = vmax.f32 %v1195, %v1221
    %v1226 = vmax.f32 %v1196, %v1222
    %v1227 = vsub.f32 %v1195, %v1225
    %v1228 = vsub.f32 %v1196, %v1226
    %v1229 = vmul.f32 %v1227, 1.442695
    %v1230 = vpow.pop %v1229
    %v1231 = vmul.f32 %v1228, 1.442695
    %v1232 = vpow.pop %v1231
    %v1235 = vrot.slane %v1225, 7
    %v1236 = vrot.slane %v1226, 7
    %v1239 = vsub.f32 %v1217, %v1235
    %v1240 = vsub.f32 %v1218, %v1236
    %v1241 = vmul.f32 %v1239, 1.442695
    %v1242 = vpow.pop %v1241
    %v1243 = vmul.f32 %v1240, 1.442695
    %v1244 = vpow.pop %v1243
    %v1247 = vrot.slane %v1242, 1
    %v1248 = vrot.slane %v1244, 1
    %v1251 = vadd.f32 %v1230, %v1247
    %v1252 = vadd.f32 %v1232, %v1248
    %s1253 = sld [smem:[#allocation2 + $0x2]]
    %v1254 = vstv %s1253
    %v1255 = vadd.f32 %v1254, %v1171
    %v1256 = vadd.f32 %v1254, %v1173
    %v1257 = vmul.f32 %v1164, %v1164
    %v1258 = vmul.f32 %v1166, %v1166
    %v1259 = vrot.slane %v1257, 4
    %v1260 = vadd.f32 %v1257, %v1259
    %v1261 = vrot.slane %v1260, 2
    %v1262 = vadd.f32 %v1260, %v1261
    %v1263 = vrot.slane %v1262, 1
    %v1264 = vadd.f32 %v1262, %v1263
    %v1265 = vrot.slane %v1258, 4
    %v1266 = vadd.f32 %v1258, %v1265
    %v1267 = vrot.slane %v1266, 2
    %v1268 = vadd.f32 %v1266, %v1267
    %v1269 = vrot.slane %v1268, 1
    %v1270 = vadd.f32 %v1268, %v1269
    %v1271 = vmul.f32 %v1264, 0.5
    %v1272 = vmul.f32 %v1270, 0.5
    %v1273 = vsub.f32 %v1255, %v1271
    %v1274 = vsub.f32 %v1256, %v1272
    %v1277 = vrot.slane %v1273, 2
    %v1278 = vrot.slane %v1274, 2
    %v1281 = vmax.f32 %v1225, %v1277
    %v1282 = vmax.f32 %v1226, %v1278
    %v1283 = vsub.f32 %v1225, %v1281
    %v1284 = vsub.f32 %v1226, %v1282
    %v1285 = vmul.f32 %v1283, 1.442695
    %v1286 = vpow.pop %v1285
    %v1287 = vmul.f32 %v1284, 1.442695
    %v1288 = vpow.pop %v1287
    %v1289 = vmul.f32 %v1251, %v1286
    %v1290 = vmul.f32 %v1252, %v1288
    %v1293 = vrot.slane %v1281, 6
    %v1294 = vrot.slane %v1282, 6
    %v1297 = vsub.f32 %v1273, %v1293
    %v1298 = vsub.f32 %v1274, %v1294
    %v1299 = vmul.f32 %v1297, 1.442695
    %v1300 = vpow.pop %v1299
    %v1301 = vmul.f32 %v1298, 1.442695
    %v1302 = vpow.pop %v1301
    %v1305 = vrot.slane %v1300, 2
    %v1306 = vrot.slane %v1302, 2
    %v1309 = vadd.f32 %v1289, %v1305
    %v1310 = vadd.f32 %v1290, %v1306
    %v1311 = vlog2.pop %v1309
    %v1312 = vmul.f32 %v1311, 0.6931472
    %v1313 = vlog2.pop %v1310
    %v1314 = vmul.f32 %v1313, 0.6931472
    %v1315 = vadd.f32 %v1281, %v1312
    %v1316 = vadd.f32 %v1282, %v1314
    %v1319 = vcombine.low %v1315, %v1316
    %v1321 = vunpack.c.l.s4 1966171168
    %v1322 = vunpack.c.0.s8 %v1321
    %v1323 = vlaneseq
    %v1324 = vshrl.u32 %v1323, 7
    %v1325 = vsub.s32 %v1322, %v1324
    %v1326 = vrot.slane %v1319, %v1325
    %v1328 = vunpack.c.l.s4 1966171168
    %v1329 = vunpack.c.0.s8 %v1328
    %v1330 = vlaneseq
    %v1331 = vshrl.u32 %v1330, 7
    %v1332 = vsub.s32 %v1329, %v1331
    %v1333 = vrot.slane %v1326, %v1332
    %v1335 = vlaneseq
    %vm1336 = vcmp.ge.s32.totalorder %v1335, 0
    %vm1337 = vcmp.lt.s32.totalorder %v1335, 256
    %vm1338 = vmand %vm1336, %vm1337
    %1339 = vst.msk [vmem:[#allocation5] sm:$0x3] %vm1338, %v1333
    // Predicated region
    $region18: #{tpu_custom_call.1} parent=1 // pred_check
      _
    $region19: #{tpu_custom_call.1} parent=1 // pred_check_branch
      %1341 = sbr.rel (0) target = $region21
    $region20: #{tpu_custom_call.1} parent=1 // pred_region
      %s1343 = ssub.s32 32, 32
      %1344 = vsyncadd [#allocation3], %s1343
      %s1346 = sshll.u32 [#allocation5], 4
      %s1347 = int_to_ptr.vmem [resolvable:$true] %s1346
      %1349 = dma.vmem_to_hbm [thread:$0]  %s1347, 32, %s3, [#allocation3]
    $region21: #{tpu_custom_call.1} parent=1 // pred_fallthru
      _
    // Predicated region
    $region22: #{tpu_custom_call.1} parent=1 // pred_check
      _
    $region23: #{tpu_custom_call.1} parent=1 // pred_check_branch
      %1351 = sbr.rel (0) target = $region25
    $region24: #{tpu_custom_call.1} parent=1 // pred_region
      %1352 = dma.done [#allocation3], 32
    $region25: #{tpu_custom_call.1} parent=1 // pred_fallthru
      _
    %1353 = vsyncpa [#allocation3], 1
    %1354 = vsyncpa [#allocation4], 1

</llo_original>
